<compile_context>
chip_gen: v6e
topology: v6e:2x2x1
jax: 0.10.0
libtpu: 0.0.40
codegen_flags: <defaults>
</compile_context>

<pallas_src>
import functools

import jax
import jax.numpy as jnp
from jax.experimental import pallas as pl
from jax.experimental.pallas import tpu as pltpu


def _focal_kernel(x_ref, t_ref, o_ref, acc_ref, *, gamma, alpha, hw, thw,
                  padded):
    """One (image, pixel-tile) grid step.

    x_ref   : (1, C, THW) logits tile (storage dtype; upcast here)
    t_ref   : (1, 1, THW) int32 target class per pixel
    o_ref   : (1, 1, 1)   f32 per-image loss sum (written in epilogue)
    acc_ref : (1, THW)    f32 elementwise running loss accumulator
    """
    j = pl.program_id(1)

    @pl.when(j == 0)
    def _():
        acc_ref[...] = jnp.zeros_like(acc_ref)

    x = x_ref[0].astype(jnp.float32)          # (C, THW)  classes on sublanes
    t = t_ref[0]                              # (1, THW)  int32 targets

    num_classes = x.shape[0]

    # Numerically stable softmax pieces; reductions are over the tiny class
    # (sublane) axis, so every op runs on full 128-lane vregs.
    m = jnp.max(x, axis=0, keepdims=True)                      # (1, THW)
    ez = jnp.exp(x - m)                                        # (C, THW)
    sez = jnp.sum(ez, axis=0, keepdims=True)                   # (1, THW)

    # One-hot gather of the target class via a sublane iota.
    ci = jax.lax.broadcasted_iota(jnp.int32, x.shape, 0)       # (C, THW)
    onehot = (ci == t).astype(jnp.float32)                     # (C, THW)
    xt = jnp.sum(x * onehot, axis=0, keepdims=True)            # (1, THW)
    ezt = jnp.sum(ez * onehot, axis=0, keepdims=True)          # (1, THW)

    logpt = (xt - m) - jnp.log(sez)                            # (1, THW)
    pt = ezt / sez                                             # == exp(logpt)

    if alpha is not None:
        # at = alpha[target] via a C-way unrolled select (alpha is static).
        at = jnp.full(logpt.shape, jnp.float32(alpha[0]))
        for c in range(1, num_classes):
            at = jnp.where(t == c, jnp.float32(alpha[c]), at)
        logpt = logpt * at

    # (1 - pt) ** gamma without pow's exp/log pair when gamma is integral.
    one_minus_pt = 1.0 - pt
    if float(gamma) == int(gamma) and gamma >= 0:
        w = jnp.ones_like(pt)
        for _ in range(int(gamma)):
            w = w * one_minus_pt
    else:
        w = one_minus_pt ** jnp.float32(gamma)

    loss = -w * logpt                                          # (1, THW)

    if padded:  # mask pixels past the true H*W (only when the pixel axis was padded)
        pos = j * thw + jax.lax.broadcasted_iota(jnp.int32, loss.shape, 1)
        loss = jnp.where(pos < hw, loss, 0.0)

    acc_ref[...] += loss

    @pl.when(j == pl.num_programs(1) - 1)
    def _():
        o_ref[0] = jnp.sum(acc_ref[...], axis=1, keepdims=True)   # (1, 1)


def multi_focal_loss(x, target, *, gamma=2.0, alpha=None, size_average=True,
                     max_pixels_per_step=8192):
    """JAX/Pallas equivalent of MultiFocalLoss.forward.

    x:      (N, C, H, W) logits (native NCHW, consumed without transpose/cast)
    target: (N, H, W)    integer class labels
    """
    N, C, H, W = x.shape
    hw = H * W
    m_total = N * hw

    xr = x.reshape(N, C, hw)                       # free reshape (contiguous NCHW)
    t = target.reshape(N, 1, hw).astype(jnp.int32)

    # Pixel tile: as large as possible (amortizes per-step pipeline overhead)
    # while being a multiple of 128 lanes, or the full H*W when it is small.
    if hw <= max_pixels_per_step:
        thw, hw_pad = hw, hw
    else:
        assert max_pixels_per_step % 128 == 0
        thw = max_pixels_per_step
        hw_pad = -(-hw // thw) * thw
        if hw_pad != hw:
            # TODO(synk): a BoundedSlice tail tile would avoid this pad copy.
            xr = jnp.pad(xr, ((0, 0), (0, 0), (0, hw_pad - hw)))
            t = jnp.pad(t, ((0, 0), (0, 0), (0, hw_pad - hw)))
    n_j = hw_pad // thw
    padded = hw_pad != hw

    # alpha is a static __init__-time parameter -> bake into the kernel.
    if alpha is None:
        alpha_t = None
    elif isinstance(alpha, (int, float)) and not isinstance(alpha, bool):
        alpha_t = (float(alpha), 1.0 - float(alpha))
    else:
        alpha_t = tuple(float(a) for a in alpha)
    if alpha_t is not None:
        assert len(alpha_t) == C, (
            f"alpha has {len(alpha_t)} entries but input has {C} classes")

    kernel = functools.partial(_focal_kernel, gamma=float(gamma),
                               alpha=alpha_t, hw=hw, thw=thw, padded=padded)

    per_image = pl.pallas_call(
        kernel,
        out_shape=jax.ShapeDtypeStruct((N, 1, 1), jnp.float32),
        grid_spec=pltpu.PrefetchScalarGridSpec(
            num_scalar_prefetch=0,
            grid=(N, n_j),
            in_specs=[
                pl.BlockSpec((1, C, thw), lambda n, j: (n, 0, j)),  # logits
                pl.BlockSpec((1, 1, thw), lambda n, j: (n, 0, j)),  # targets
            ],
            out_specs=pl.BlockSpec((1, 1, 1), lambda n, j: (n, 0, 0)),
            scratch_shapes=[pltpu.VMEM((1, thw), jnp.float32)],
        ),
        compiler_params=pltpu.CompilerParams(
            dimension_semantics=("parallel", "arbitrary")),
    )(xr, t)

    total = jnp.sum(per_image)
    if size_average:
        return total / jnp.float32(m_total)
    return total


def _reference(x, target, gamma, alpha, size_average):
    N, C, H, W = x.shape
    xr = jnp.transpose(x, (0, 2, 3, 1)).reshape(-1, C).astype(jnp.float32)
    t = target.reshape(-1).astype(jnp.int32)
    logp = jax.nn.log_softmax(xr, axis=-1)
    logpt = jnp.take_along_axis(logp, t[:, None], axis=1)[:, 0]
    pt = jnp.exp(logpt)
    if alpha is not None:
        if isinstance(alpha, (int, float)) and not isinstance(alpha, bool):
            a = jnp.asarray([alpha, 1.0 - alpha], jnp.float32)
        else:
            a = jnp.asarray(alpha, jnp.float32)
        logpt = logpt * a[t]
    loss = -1.0 * (1.0 - pt) ** gamma * logpt
    return loss.mean() if size_average else loss.sum()


if __name__ == "__main__":
    key = jax.random.PRNGKey(0)
    k1, k2 = jax.random.split(key)

    N, C, H, W = 2, 4, 16, 16
    x = jax.random.normal(k1, (N, C, H, W), jnp.float32)
    target = jax.random.randint(k2, (N, H, W), 0, C, jnp.int32)

    gamma = 2.0
    alpha = [0.1, 0.2, 0.3, 0.4]   # per-class weights (list form of __init__)

    out = multi_focal_loss(x, target, gamma=gamma, alpha=alpha,
                           size_average=True)
    out = jax.block_until_ready(out)

    ref = _reference(x, target, gamma, alpha, True)
    assert jnp.allclose(out, ref, rtol=1e-4, atol=1e-5), (out, ref)

    print("KERNEL_OK")
</pallas_src>

<mosaic_0001>
module attributes {stable_mosaic.version = 11 : i64} {
  func.func @_focal_kernel(%arg0: i32, %arg1: i32, %arg2: memref<1x4x256xf32, #tpu.memory_space<vmem>>, %arg3: memref<1x1x256xi32, #tpu.memory_space<vmem>>, %arg4: memref<1x1x1xf32, #tpu.memory_space<vmem>>, %arg5: memref<1x256xf32, #tpu.memory_space<vmem>>) attributes {dimension_semantics = [#tpu.dimension_semantics<parallel>, #tpu.dimension_semantics<arbitrary>], iteration_bounds = array<i64: 2, 1>, scalar_prefetch = 0 : i64, scratch_operands = 1 : i64, tpu.core_type = #tpu.core_type<tc>, window_params = [{transform_indices = @transform_0, window_bounds = array<i64: 1, 4, 256>}, {transform_indices = @transform_1, window_bounds = array<i64: 1, 1, 256>}, {transform_indices = @transform_2, window_bounds = array<i64: 1, 1, 1>}]} {
    %c0_i32 = arith.constant 0 : i32
    %0 = arith.cmpi eq, %arg1, %c0_i32 : i32
    %1 = arith.extui %0 : i1 to i32
    %c0_i32_0 = arith.constant 0 : i32
    %2 = arith.cmpi ne, %1, %c0_i32_0 : i32
    scf.if %2 {
      %cst_22 = arith.constant 0.000000e+00 : f32
      %57 = vector.broadcast %cst_22 : f32 to vector<1x256xf32>
      %c0_23 = arith.constant 0 : index
      %c0_24 = arith.constant 0 : index
      %58 = vector.load %arg5[%c0_23, %c0_24] : memref<1x256xf32, #tpu.memory_space<vmem>>, vector<1x256xf32>
      tpu.vector_store %arg5[%c0_23, %c0_24], %57 {strides = array<i32>} : memref<1x256xf32, #tpu.memory_space<vmem>>, vector<1x256xf32>,
    } else {
    }
    %c0 = arith.constant 0 : index
    %c0_1 = arith.constant 0 : index
    %c0_2 = arith.constant 0 : index
    %3 = vector.load %arg2[%c0, %c0_1, %c0_2] : memref<1x4x256xf32, #tpu.memory_space<vmem>>, vector<1x4x256xf32>
    %4 = vector.shape_cast %3 : vector<1x4x256xf32> to vector<4x256xf32>
    %c0_3 = arith.constant 0 : index
    %c0_4 = arith.constant 0 : index
    %c0_5 = arith.constant 0 : index
    %5 = vector.load %arg3[%c0_3, %c0_4, %c0_5] : memref<1x1x256xi32, #tpu.memory_space<vmem>>, vector<1x1x256xi32>
    %6 = vector.shape_cast %5 : vector<1x1x256xi32> to vector<1x256xi32>
    %cst = arith.constant dense<0xFF800000> : vector<256xf32>
    %7 = vector.multi_reduction <maximumf>, %4, %cst [0] : vector<4x256xf32> to vector<256xf32>
    %8 = vector.shape_cast %7 : vector<256xf32> to vector<1x256xf32>
    %9 = vector.broadcast %8 : vector<1x256xf32> to vector<4x256xf32>
    %10 = arith.subf %4, %9 : vector<4x256xf32>
    %11 = math.exp %10 : vector<4x256xf32>
    %cst_6 = arith.constant dense<0.000000e+00> : vector<256xf32>
    %12 = vector.multi_reduction <add>, %11, %cst_6 [0] : vector<4x256xf32> to vector<256xf32>
    %13 = vector.shape_cast %12 : vector<256xf32> to vector<1x256xf32>
    %14 = tpu.iota {dimensions = array<i32: 0>} : vector<4x256xi32>
    %15 = vector.broadcast %6 : vector<1x256xi32> to vector<4x256xi32>
    %16 = arith.cmpi eq, %14, %15 : vector<4x256xi32>
    %17 = arith.extui %16 : vector<4x256xi1> to vector<4x256xi32>
    %18 = arith.sitofp %17 : vector<4x256xi32> to vector<4x256xf32>
    %19 = arith.mulf %4, %18 : vector<4x256xf32>
    %cst_7 = arith.constant dense<0.000000e+00> : vector<256xf32>
    %20 = vector.multi_reduction <add>, %19, %cst_7 [0] : vector<4x256xf32> to vector<256xf32>
    %21 = vector.shape_cast %20 : vector<256xf32> to vector<1x256xf32>
    %22 = arith.mulf %11, %18 : vector<4x256xf32>
    %cst_8 = arith.constant dense<0.000000e+00> : vector<256xf32>
    %23 = vector.multi_reduction <add>, %22, %cst_8 [0] : vector<4x256xf32> to vector<256xf32>
    %24 = vector.shape_cast %23 : vector<256xf32> to vector<1x256xf32>
    %25 = arith.subf %21, %8 : vector<1x256xf32>
    %26 = math.log %13 : vector<1x256xf32>
    %27 = arith.subf %25, %26 : vector<1x256xf32>
    %28 = arith.divf %24, %13 : vector<1x256xf32>
    %cst_9 = arith.constant 1.000000e-01 : f32
    %29 = vector.broadcast %cst_9 : f32 to vector<1x256xf32>
    %c1_i32 = arith.constant 1 : i32
    %30 = vector.broadcast %c1_i32 : i32 to vector<1x256xi32>
    %31 = arith.cmpi eq, %6, %30 : vector<1x256xi32>
    %cst_10 = arith.constant 2.000000e-01 : f32
    %32 = vector.broadcast %cst_10 : f32 to vector<1x256xf32>
    %33 = arith.select %31, %32, %29 : vector<1x256xi1>, vector<1x256xf32>
    %c2_i32 = arith.constant 2 : i32
    %34 = vector.broadcast %c2_i32 : i32 to vector<1x256xi32>
    %35 = arith.cmpi eq, %6, %34 : vector<1x256xi32>
    %cst_11 = arith.constant 3.000000e-01 : f32
    %36 = vector.broadcast %cst_11 : f32 to vector<1x256xf32>
    %37 = arith.select %35, %36, %33 : vector<1x256xi1>, vector<1x256xf32>
    %c3_i32 = arith.constant 3 : i32
    %38 = vector.broadcast %c3_i32 : i32 to vector<1x256xi32>
    %39 = arith.cmpi eq, %6, %38 : vector<1x256xi32>
    %cst_12 = arith.constant 4.000000e-01 : f32
    %40 = vector.broadcast %cst_12 : f32 to vector<1x256xf32>
    %41 = arith.select %39, %40, %37 : vector<1x256xi1>, vector<1x256xf32>
    %42 = arith.mulf %27, %41 : vector<1x256xf32>
    %cst_13 = arith.constant 1.000000e+00 : f32
    %43 = vector.broadcast %cst_13 : f32 to vector<1x256xf32>
    %44 = arith.subf %43, %28 : vector<1x256xf32>
    %cst_14 = arith.constant 1.000000e+00 : f32
    %45 = vector.broadcast %cst_14 : f32 to vector<1x256xf32>
    %46 = arith.mulf %45, %44 : vector<1x256xf32>
    %47 = arith.mulf %46, %44 : vector<1x256xf32>
    %cst_15 = arith.constant 0.000000e+00 : f32
    %48 = vector.broadcast %cst_15 : f32 to vector<1x256xf32>
    %49 = arith.subf %48, %47 : vector<1x256xf32>
    %50 = arith.mulf %49, %42 : vector<1x256xf32>
    %c0_16 = arith.constant 0 : index
    %c0_17 = arith.constant 0 : index
    %51 = vector.load %arg5[%c0_16, %c0_17] : memref<1x256xf32, #tpu.memory_space<vmem>>, vector<1x256xf32>
    %52 = arith.addf %51, %50 : vector<1x256xf32>
    %c0_18 = arith.constant 0 : index
    %c0_19 = arith.constant 0 : index
    %53 = vector.load %arg5[%c0_18, %c0_19] : memref<1x256xf32, #tpu.memory_space<vmem>>, vector<1x256xf32>
    tpu.vector_store %arg5[%c0_18, %c0_19], %52 {strides = array<i32>} : memref<1x256xf32, #tpu.memory_space<vmem>>, vector<1x256xf32>,
    %c0_i32_20 = arith.constant 0 : i32
    %54 = arith.cmpi eq, %arg1, %c0_i32_20 : i32
    %55 = arith.extui %54 : i1 to i32
    %c0_i32_21 = arith.constant 0 : i32
    %56 = arith.cmpi ne, %55, %c0_i32_21 : i32
    scf.if %56 {
      %c0_22 = arith.constant 0 : index
      %c0_23 = arith.constant 0 : index
      %57 = vector.load %arg5[%c0_22, %c0_23] : memref<1x256xf32, #tpu.memory_space<vmem>>, vector<1x256xf32>
      %cst_24 = arith.constant dense<0.000000e+00> : vector<1xf32>
      %58 = vector.multi_reduction <add>, %57, %cst_24 [1] : vector<1x256xf32> to vector<1xf32>
      %59 = vector.shape_cast %58 : vector<1xf32> to vector<1x1xf32>
      %c0_25 = arith.constant 0 : index
      %c0_26 = arith.constant 0 : index
      %c0_27 = arith.constant 0 : index
      %60 = vector.load %arg4[%c0_25, %c0_26, %c0_27] : memref<1x1x1xf32, #tpu.memory_space<vmem>>, vector<1x1x1xf32>
      %61 = vector.shape_cast %60 : vector<1x1x1xf32> to vector<1x1xf32>
      %62 = vector.shape_cast %59 : vector<1x1xf32> to vector<1x1x1xf32>
      tpu.vector_store %arg4[%c0_25, %c0_26, %c0_27], %62 {strides = array<i32>} : memref<1x1x1xf32, #tpu.memory_space<vmem>>, vector<1x1x1xf32>,
    } else {
    }
    return
  }
  func.func @transform_0(%arg0: i32, %arg1: i32) -> (i32, i32, i32) {
    %c0_i32 = arith.constant 0 : i32
    %c0_i32_0 = arith.constant 0 : i32
    return %arg0, %c0_i32, %arg1 : i32, i32, i32
  }
  func.func @transform_1(%arg0: i32, %arg1: i32) -> (i32, i32, i32) {
    %c0_i32 = arith.constant 0 : i32
    %c0_i32_0 = arith.constant 0 : i32
    return %arg0, %c0_i32, %arg1 : i32, i32, i32
  }
  func.func @transform_2(%arg0: i32, %arg1: i32) -> (i32, i32, i32) {
    %c0_i32 = arith.constant 0 : i32
    %c0_i32_0 = arith.constant 0 : i32
    %c0_i32_1 = arith.constant 0 : i32
    return %arg0, %c0_i32, %c0_i32_0 : i32, i32, i32
  }
}

</mosaic_0001>

<llo_original>
// kernel: tpu_custom_call.1
$region0: #{tpu_custom_call.1}
  #allocation0 [shape = 'u32[]', space=smem, size = 0x4, offset = 0x4, fixed_abs, tag = 'smem constant byte address 0x4 - core index']
  #allocation1 [shape = 'u32[144,128]{1,0:T(1,128)}', space=vmem, size = 0x12000, scoped, tag = 'internal scratch']
  #allocation2 [shape = 'f32[1,256]{1,0:T(1,128)}', space=vmem, size = 0x400, scoped, tag = 'scratch operand']
  %s0 = inlined_call_operand.hbm [shape: f32[2,4,256], index: 0, kind: input, shape index: {}]
  %s1 = inlined_call_operand.hbm [shape: s32[2,1,256], index: 1, kind: input, shape index: {}]
  %s2 = inlined_call_operand.vmem [shape: f32[2,1,1], index: 2, kind: output, shape index: {}]
  %s3 = sld [smem:[#allocation0]]
  $region57: #{tpu_custom_call.1} parent=0
    _
  %s5 = ssub.s32 1, %s3
  %s6 = scalar_select 0, %s5, %s3
  $region1: #{tpu_custom_call.1} parent=0
    #allocation3 [shape = 'u8[8192]{0}', space=vmem, size = 0x2000, scoped, tag = 'input window, operand 0']
    #allocation4 [shape = 's32[2]{0}', space=sflag, size = 0x8, scoped, tag = 'scoped memory for tpu_custom_call.1']
    #allocation5 [shape = 'u8[2048]{0}', space=vmem, size = 0x800, scoped, tag = 'input window, operand 1']
    #allocation6 [shape = 's32[2]{0}', space=sflag, size = 0x8, scoped, tag = 'scoped memory for tpu_custom_call.1']
    %7 = vsyncpa [#allocation4], 0
    %s8 = scalar_lea.sflag [#allocation4], 1
    %9 = vsyncpa %s8, 0
    %10 = vsyncpa [#allocation6], 0
    %s11 = scalar_lea.sflag [#allocation6], 1
    %12 = vsyncpa %s11, 0
    loop: start=0, step=1, limit=4
    $region2: #{tpu_custom_call.1} parent=1 // loop_pre_header
      _
    $region3: #{tpu_custom_call.1} parent=1 // loop_header
      %s14 = sphi 0, %s18
      %p15 = scmp.ge.s32.totalorder %s14, 4
      %s21 = sphi 0, %s33
      %s22 = sphi 0, %s29
      %s23 = sphi 0, %s21
      %s24 = sphi 0, %s22
      %s25 = sphi 0, %s23
      %s26 = sphi 0, %s24
      %s38 = sphi 0, %s40
      %s41 = sphi 0, %s38
      %s42 = sphi 0, %s41
      %s58 = sphi 0, %s42
      %s66 = sphi 0, %s68
      %s69 = sphi 0, %s66
      %s70 = sphi 0, %s69
      %s86 = sphi 0, %s70
      %s92 = sphi 0, %s94
      %s95 = sphi 0, %s92
      %s96 = sphi 0, %s95
      %s112 = sphi 0, %s96
    $region4: #{tpu_custom_call.1} parent=1 // loop_header_branch
      %17 = sbr.rel (%p15) target = $region8
    $region5: #{tpu_custom_call.1} parent=1 // loop_body
      %s19 = ssub.s32 %s14, 1
      %s20 = ssub.s32 %s14, 2
      %s27 = sadd.s32 1, %s22
      %p28 = scmp.ge.s32.totalorder %s27, 1
      %s29 = scalar_select %p28, 0, %s27
      %s30 = sadd.s32 1, %s21
      %s31 = scalar_select %p28, %s30, %s21
      %p32 = scmp.ge.s32.totalorder %s31, 2
      %s33 = scalar_select %p32, 0, %s31
      %s34 = ssub.s32 %s21, %s33
      %s35 = ssub.s32 %s22, %s29
      %s36 = sor.u32 %s34, %s35
      %p37 = scmp.eq.s32.totalorder %s36, 0
      %s39 = sadd.s32 %s38, 1
      %s40 = scalar_select %p37, %s38, %s39
      %p43 = pneg %p37
      %p44 = scmp.eq.s32.totalorder %s14, 1
      %p45 = por %p43, %p44
      %p46 = scmp.ne.s32.totalorder %s38, %s41
      %p47 = scmp.eq.s32.totalorder %s14, 0
      %p48 = por %p46, %p47
      %p49 = scmp.ne.s32.totalorder %s38, %s41
      %p50 = scmp.eq.s32.totalorder %s19, 1
      %p51 = por %p49, %p50
      %p52 = scmp.ne.s32.totalorder %s41, %s42
      %p53 = scmp.eq.s32.totalorder %s19, 0
      %p54 = por %p52, %p53
      %p55 = scmp.ne.s32.totalorder %s41, %s42
      %p56 = scmp.eq.s32.totalorder %s20, 1
      %p57 = por %p55, %p56
      %p59 = scmp.ne.s32.totalorder %s42, %s58
      %p60 = scmp.eq.s32.totalorder %s20, 0
      %p61 = por %p59, %p60
      %s62 = ssub.s32 %s21, %s33
      %s63 = ssub.s32 %s22, %s29
      %s64 = sor.u32 %s62, %s63
      %p65 = scmp.eq.s32.totalorder %s64, 0
      %s67 = sadd.s32 %s66, 1
      %s68 = scalar_select %p65, %s66, %s67
      %p71 = pneg %p65
      %p72 = scmp.eq.s32.totalorder %s14, 1
      %p73 = por %p71, %p72
      %p74 = scmp.ne.s32.totalorder %s66, %s69
      %p75 = scmp.eq.s32.totalorder %s14, 0
      %p76 = por %p74, %p75
      %p77 = scmp.ne.s32.totalorder %s66, %s69
      %p78 = scmp.eq.s32.totalorder %s19, 1
      %p79 = por %p77, %p78
      %p80 = scmp.ne.s32.totalorder %s69, %s70
      %p81 = scmp.eq.s32.totalorder %s19, 0
      %p82 = por %p80, %p81
      %p83 = scmp.ne.s32.totalorder %s69, %s70
      %p84 = scmp.eq.s32.totalorder %s20, 1
      %p85 = por %p83, %p84
      %p87 = scmp.ne.s32.totalorder %s70, %s86
      %p88 = scmp.eq.s32.totalorder %s20, 0
      %p89 = por %p87, %p88
      %s90 = ssub.s32 %s21, %s33
      %p91 = scmp.eq.s32.totalorder %s90, 0
      %s93 = sadd.s32 %s92, 1
      %s94 = scalar_select %p91, %s92, %s93
      %p97 = pneg %p91
      %p98 = scmp.eq.s32.totalorder %s14, 1
      %p99 = por %p97, %p98
      %p100 = scmp.ne.s32.totalorder %s92, %s95
      %p101 = scmp.eq.s32.totalorder %s14, 0
      %p102 = por %p100, %p101
      %p103 = scmp.ne.s32.totalorder %s92, %s95
      %p104 = scmp.eq.s32.totalorder %s19, 1
      %p105 = por %p103, %p104
      %p106 = scmp.ne.s32.totalorder %s95, %s96
      %p107 = scmp.eq.s32.totalorder %s19, 0
      %p108 = por %p106, %p107
      %p109 = scmp.ne.s32.totalorder %s95, %s96
      %p110 = scmp.eq.s32.totalorder %s20, 1
      %p111 = por %p109, %p110
      %p113 = scmp.ne.s32.totalorder %s96, %s112
      %p114 = scmp.eq.s32.totalorder %s20, 0
      %p115 = por %p113, %p114
      %p116 = scmp.le.s32.totalorder 1, %s14
      %p117 = scmp.lt.s32.totalorder %s14, 3
      %p118 = pnand %p116, %p117
      %p119 = pneg %p118
      // Predicated region
      $region9: #{tpu_custom_call.1} parent=5 // pred_check
        _
      $region10: #{tpu_custom_call.1} parent=5 // pred_check_branch
        %121 = sbr.rel (%p118) target = $region12
      $region11: #{tpu_custom_call.1} parent=5 // pred_region
        %s122 = ssub.s32 %s14, 1
      $region12: #{tpu_custom_call.1} parent=5 // pred_fallthru
        _
      %p123 = scmp.lt.s32.totalorder %s14, 2
      // Predicated region
      $region13: #{tpu_custom_call.1} parent=5 // pred_check
        %p124 = pneg %p123
      $region14: #{tpu_custom_call.1} parent=5 // pred_check_branch
        %126 = sbr.rel (%p124) target = $region16
      $region15: #{tpu_custom_call.1} parent=5 // pred_region
        // Predicated region
        $region17: #{tpu_custom_call.1} parent=15 // pred_check
          %p127 = pneg %p48
        $region18: #{tpu_custom_call.1} parent=15 // pred_check_branch
          %129 = sbr.rel (%p127) target = $region20
        $region19: #{tpu_custom_call.1} parent=15 // pred_region
          %s130 = sand.u32 %s38, 1
          %s131 = scalar_lea.sflag [#allocation4], %s130
          %s132 = sand.u32 %s38, 1
          %s133 = smul.addr %s132, 8
          %s134 = scalar_lea.vmem [#allocation3], %s133
          %s135 = smul.u32 2, %s22
          %s137 = ssub.s32 128, 128
          %138 = vsyncadd %s131, %s137
          %s139 = smul.addr %s21, 2
          %s140 = sadd.s32 %s135, %s139
          %s141 = smul.addr %s140, 64
          %s142 = scalar_lea.hbm %s0, %s141
          %s144 = sshll.u32 %s134, 4
          %s145 = int_to_ptr.vmem [resolvable:$true] %s144
          %147 = dma.hbm_to_vmem [thread:$0]  %s142, 128, %s145, %s131
        $region20: #{tpu_custom_call.1} parent=15 // pred_fallthru
          _
        // Predicated region
        $region21: #{tpu_custom_call.1} parent=15 // pred_check
          %p148 = pneg %p76
        $region22: #{tpu_custom_call.1} parent=15 // pred_check_branch
          %150 = sbr.rel (%p148) target = $region24
        $region23: #{tpu_custom_call.1} parent=15 // pred_region
          %s151 = sand.u32 %s66, 1
          %s152 = scalar_lea.sflag [#allocation6], %s151
          %s153 = sand.u32 %s66, 1
          %s154 = smul.addr %s153, 2
          %s155 = scalar_lea.vmem [#allocation5], %s154
          %s156 = smul.u32 2, %s22
          %s158 = ssub.s32 32, 32
          %159 = vsyncadd %s152, %s158
          %s160 = smul.addr %s21, 2
          %s161 = sadd.s32 %s156, %s160
          %s162 = smul.addr %s161, 16
          %s163 = scalar_lea.hbm %s1, %s162
          %s165 = sshll.u32 %s155, 4
          %s166 = int_to_ptr.vmem [resolvable:$true] %s165
          %168 = dma.hbm_to_vmem [thread:$0]  %s163, 32, %s166, %s152
        $region24: #{tpu_custom_call.1} parent=15 // pred_fallthru
          _
      $region16: #{tpu_custom_call.1} parent=5 // pred_fallthru
        _
      %p169 = scmp.le.s32.totalorder 1, %s14
      %p170 = scmp.lt.s32.totalorder %s14, 3
      %p171 = pnand %p169, %p170
      %p172 = pneg %p171
      // Predicated region
      $region25: #{tpu_custom_call.1} parent=5 // pred_check
        _
      $region26: #{tpu_custom_call.1} parent=5 // pred_check_branch
        %174 = sbr.rel (%p171) target = $region28
      $region27: #{tpu_custom_call.1} parent=5 // pred_region
        %s175 = ssub.s32 %s14, 1
        %s176 = sand.u32 %s41, 1
        %s177 = scalar_lea.sflag [#allocation4], %s176
        %s178 = sand.u32 %s41, 1
        %s179 = smul.addr %s178, 8
        %s180 = scalar_lea.vmem [#allocation3], %s179
        // Predicated region
        $region29: #{tpu_custom_call.1} parent=27 // pred_check
          %p181 = pneg %p54
        $region30: #{tpu_custom_call.1} parent=27 // pred_check_branch
          %183 = sbr.rel (%p181) target = $region32
        $region31: #{tpu_custom_call.1} parent=27 // pred_region
          %184 = dma.done %s177, 128
        $region32: #{tpu_custom_call.1} parent=27 // pred_fallthru
          _
        %s185 = sand.u32 %s69, 1
        %s186 = scalar_lea.sflag [#allocation6], %s185
        %s187 = sand.u32 %s69, 1
        %s188 = smul.addr %s187, 2
        %s189 = scalar_lea.vmem [#allocation5], %s188
        // Predicated region
        $region33: #{tpu_custom_call.1} parent=27 // pred_check
          %p190 = pneg %p82
        $region34: #{tpu_custom_call.1} parent=27 // pred_check_branch
          %192 = sbr.rel (%p190) target = $region36
        $region35: #{tpu_custom_call.1} parent=27 // pred_region
          %193 = dma.done %s186, 32
        $region36: #{tpu_custom_call.1} parent=27 // pred_fallthru
          _
        %s194 = sand.u32 %s41, 1
        %s195 = scalar_lea.sflag [#allocation4], %s194
        %s196 = sand.u32 %s41, 1
        %s197 = smul.addr %s196, 8
        %s198 = scalar_lea.vmem [#allocation3], %s197
        %p199 = pneg %p54
        %p200 = pneg %p51
        %s201 = sand.u32 %s69, 1
        %s202 = scalar_lea.sflag [#allocation6], %s201
        %s203 = sand.u32 %s69, 1
        %s204 = smul.addr %s203, 2
        %s205 = scalar_lea.vmem [#allocation5], %s204
        %p206 = pneg %p82
        %p207 = pneg %p79
        %p208 = pneg %p108
        %p209 = pneg %p105
        %p210 = scmp.lt.s32.totalorder %s23, 1
        %s211 = scalar_select %p210, %s23, 1
        %s212 = scalar_lea.vmem %s2, %s211
        %s213 = smul.u32 2, %s24
        %s214 = smul.u32 2, %s24
        %p215 = scmp.lt.s32.totalorder %s23, 1
        %s216 = scalar_select %p215, %s23, 1
        %s217 = scalar_lea.vmem %s2, %s216
        %p218 = scmp.eq.s32.totalorder %s24, 0
        // Predicated region
        $region37: #{tpu_custom_call.1} parent=27 // pred_check
          %p219 = pneg %p218
        $region38: #{tpu_custom_call.1} parent=27 // pred_check_branch
          %221 = sbr.rel (%p219) target = $region40
        $region39: #{tpu_custom_call.1} parent=27 // pred_region
          %v222 = vlaneseq
          %vm223 = vcmp.ge.s32.totalorder %v222, 0
          %vm224 = vcmp.lt.s32.totalorder %v222, 256
          %vm225 = vmand %vm223, %vm224
          %226 = vst.msk [vmem:[#allocation2] sm:$0x3] %vm225, 0.0
        $region40: #{tpu_custom_call.1} parent=27 // pred_fallthru
          _
        %v227 = vld [vmem:[%s180] sm:$0xff]
        %v228 = vld [vmem:[%s189] sm:$0x3]
        %v230 = vcombine.high %v227, %v227
        %vm232 = vcmask 1043456
        %v233 = vsel %vm232, %v227, -inf
        %v234 = vrot.slane %v233, 4
        %v235 = vmax.f32 %v233, %v234
        %v236 = vrot.slane %v235, 2
        %v237 = vmax.f32 %v235, %v236
        %v238 = vrot.slane %v237, 1
        %v239 = vmax.f32 %v237, %v238
        %v240 = vsel %vm232, %v230, -inf
        %v241 = vrot.slane %v240, 4
        %v242 = vmax.f32 %v240, %v241
        %v243 = vrot.slane %v242, 2
        %v244 = vmax.f32 %v242, %v243
        %v245 = vrot.slane %v244, 1
        %v246 = vmax.f32 %v244, %v245
        %v249 = vcombine.low %v239, %v246
        %v251 = vsub.f32 %v227, %v249
        %v252 = vmul.f32 %v251, 1.442695
        %v253 = vpow.pop %v252
        %v255 = vcombine.high %v253, %v253
        %v257 = vsel %vm232, %v253, 0.0
        %v258 = vrot.slane %v257, 4
        %v259 = vadd.f32 %v257, %v258
        %v260 = vrot.slane %v259, 2
        %v261 = vadd.f32 %v259, %v260
        %v262 = vrot.slane %v261, 1
        %v263 = vadd.f32 %v261, %v262
        %v264 = vsel %vm232, %v255, 0.0
        %v265 = vrot.slane %v264, 4
        %v266 = vadd.f32 %v264, %v265
        %v267 = vrot.slane %v266, 2
        %v268 = vadd.f32 %v266, %v267
        %v269 = vrot.slane %v268, 1
        %v270 = vadd.f32 %v268, %v269
        %v271 = vlaneseq
        %v272 = vshrl.u32 %v271, 7
        %v273 = vlaneseq
        %v274 = vshrl.u32 %v273, 7
        %v275 = vsub.s32 0, %v274
        %v276 = vrot.slane %v228, %v275
        %v277 = vlaneseq
        %v278 = vshrl.u32 %v277, 7
        %v279 = vsub.s32 1, %v278
        %v280 = vrot.slane %v228, %v279
        %vm281 = vcmp.eq.s32.totalorder %v272, %v276
        %vm282 = vcmp.eq.s32.totalorder %v272, %v280
        %v283 = vsel %vm281, 1, 0
        %v284 = vsel %vm282, 1, 0
        %v285 = vcvt.s32.f32 %v283
        %v286 = vcvt.s32.f32 %v284
        %v289 = vcombine.low %v285, %v286
        %v291 = vmul.f32 %v227, %v289
        %v293 = vcombine.high %v291, %v291
        %v295 = vsel %vm232, %v291, 0.0
        %v296 = vrot.slane %v295, 4
        %v297 = vadd.f32 %v295, %v296
        %v298 = vrot.slane %v297, 2
        %v299 = vadd.f32 %v297, %v298
        %v300 = vrot.slane %v299, 1
        %v301 = vadd.f32 %v299, %v300
        %v302 = vsel %vm232, %v293, 0.0
        %v303 = vrot.slane %v302, 4
        %v304 = vadd.f32 %v302, %v303
        %v305 = vrot.slane %v304, 2
        %v306 = vadd.f32 %v304, %v305
        %v307 = vrot.slane %v306, 1
        %v308 = vadd.f32 %v306, %v307
        %v309 = vmul.f32 %v253, %v289
        %v311 = vcombine.high %v309, %v309
        %v313 = vsel %vm232, %v309, 0.0
        %v314 = vrot.slane %v313, 4
        %v315 = vadd.f32 %v313, %v314
        %v316 = vrot.slane %v315, 2
        %v317 = vadd.f32 %v315, %v316
        %v318 = vrot.slane %v317, 1
        %v319 = vadd.f32 %v317, %v318
        %v320 = vsel %vm232, %v311, 0.0
        %v321 = vrot.slane %v320, 4
        %v322 = vadd.f32 %v320, %v321
        %v323 = vrot.slane %v322, 2
        %v324 = vadd.f32 %v322, %v323
        %v325 = vrot.slane %v324, 1
        %v326 = vadd.f32 %v324, %v325
        %v327 = vsub.f32 %v301, %v239
        %v328 = vsub.f32 %v308, %v246
        %v329 = vlog2.pop %v263
        %v330 = vmul.f32 %v329, 0.6931472
        %v331 = vlog2.pop %v270
        %v332 = vmul.f32 %v331, 0.6931472
        %v333 = vsub.f32 %v327, %v330
        %v334 = vsub.f32 %v328, %v332
        %v335 = vrcp.pop %v263
        %v336 = vmul.f32 %v319, %v335
        %v337 = vrcp.pop %v270
        %v338 = vmul.f32 %v326, %v337
        %vm339 = vcmp.eq.s32.totalorder %v228, 1
        %v340 = vsel %vm339, 0.2, 0.1
        %vm341 = vcmp.eq.s32.totalorder %v228, 2
        %v342 = vsel %vm341, 0.3, %v340
        %vm343 = vcmp.eq.s32.totalorder %v228, 3
        %v344 = vsel %vm343, 0.4, %v342
        %v346 = vlaneseq
        %v347 = vshrl.u32 %v346, 7
        %v348 = vsub.s32 0, %v347
        %v349 = vrot.slane %v344, %v348
        %v350 = vlaneseq
        %v351 = vshrl.u32 %v350, 7
        %v352 = vsub.s32 1, %v351
        %v353 = vrot.slane %v344, %v352
        %v356 = vmul.f32 %v333, %v349
        %v357 = vmul.f32 %v334, %v353
        %v358 = vsub.f32 1.0, %v336
        %v359 = vsub.f32 1.0, %v338
        %v360 = vmul.f32 %v358, %v358
        %v361 = vmul.f32 %v359, %v359
        %v362 = vsub.f32 0.0, %v360
        %v363 = vsub.f32 0.0, %v361
        %v364 = vmul.f32 %v362, %v356
        %v365 = vmul.f32 %v363, %v357
        %v366 = vld [vmem:[#allocation2] sm:$0x3]
        %v369 = vcombine.low %v364, %v365
        %v371 = vunpack.c.l.s4 1966171168
        %v372 = vunpack.c.0.s8 %v371
        %v373 = vlaneseq
        %v374 = vshrl.u32 %v373, 7
        %v375 = vsub.s32 %v372, %v374
        %v376 = vrot.slane %v369, %v375
        %v378 = vunpack.c.l.s4 1966171168
        %v379 = vunpack.c.0.s8 %v378
        %v380 = vlaneseq
        %v381 = vshrl.u32 %v380, 7
        %v382 = vsub.s32 %v379, %v381
        %v383 = vrot.slane %v376, %v382
        %v385 = vadd.f32 %v366, %v383
        %v386 = vlaneseq
        %vm387 = vcmp.ge.s32.totalorder %v386, 0
        %vm388 = vcmp.lt.s32.totalorder %v386, 256
        %vm389 = vmand %vm387, %vm388
        %390 = vst.msk [vmem:[#allocation2] sm:$0x3] %vm389, %v385
        // Predicated region
        $region41: #{tpu_custom_call.1} parent=27 // pred_check
          %p391 = pneg %p218
        $region42: #{tpu_custom_call.1} parent=27 // pred_check_branch
          %393 = sbr.rel (%p391) target = $region44
        $region43: #{tpu_custom_call.1} parent=27 // pred_region
          %v394 = vld [vmem:[#allocation2] sm:$0x3]
          %v396 = vlaneseq
          %v397 = vshrl.u32 %v396, 7
          %v398 = vsub.s32 0, %v397
          %v399 = vrot.slane %v394, %v398
          %v400 = vlaneseq
          %v401 = vshrl.u32 %v400, 7
          %v402 = vsub.s32 1, %v401
          %v403 = vrot.slane %v394, %v402
          %vm406 = vcmask 1040384
          %v407 = vsel %vm406, %v399, 0.0
          %v408 = vsel %vm406, %v403, 0.0
          %v409 = vadd.f32 %v407, %v408
          %410 = vadd.xlane.f32.xlu0 %v409
          %v411 = vpop.xlane.xlu0 %410
          %vm412 = vcmask 0
          %413 = vst.msk [vmem:[%s217] sm:$0x1] %vm412, %v411
        $region44: #{tpu_custom_call.1} parent=27 // pred_fallthru
          _
        %p414 = scmp.lt.s32.totalorder %s23, 1
        %s415 = scalar_select %p414, %s23, 1
        %s416 = scalar_lea.vmem %s2, %s415
        // Predicated region
        $region45: #{tpu_custom_call.1} parent=27 // pred_check
          %p417 = pneg %p105
        $region46: #{tpu_custom_call.1} parent=27 // pred_check_branch
          %419 = sbr.rel (%p417) target = $region48
        $region47: #{tpu_custom_call.1} parent=27 // pred_region
          _
        $region48: #{tpu_custom_call.1} parent=27 // pred_fallthru
          _
      $region28: #{tpu_custom_call.1} parent=5 // pred_fallthru
        _
      %p420 = scmp.le.s32.totalorder 2, %s14
      // Predicated region
      $region49: #{tpu_custom_call.1} parent=5 // pred_check
        %p421 = pneg %p420
      $region50: #{tpu_custom_call.1} parent=5 // pred_check_branch
        %423 = sbr.rel (%p421) target = $region52
      $region51: #{tpu_custom_call.1} parent=5 // pred_region
        %s424 = ssub.s32 %s14, 2
        // Predicated region
        $region53: #{tpu_custom_call.1} parent=51 // pred_check
          %p425 = pneg %p111
        $region54: #{tpu_custom_call.1} parent=51 // pred_check_branch
          %427 = sbr.rel (%p425) target = $region56
        $region55: #{tpu_custom_call.1} parent=51 // pred_region
          %p428 = scmp.lt.s32.totalorder %s25, 1
          %s429 = scalar_select %p428, %s25, 1
          %s430 = scalar_lea.vmem %s2, %s429
        $region56: #{tpu_custom_call.1} parent=51 // pred_fallthru
          _
      $region52: #{tpu_custom_call.1} parent=5 // pred_fallthru
        _
    $region6: #{tpu_custom_call.1} parent=1 // loop_footer
      %s18 = sadd.s32 1, %s14
    $region7: #{tpu_custom_call.1} parent=1 // loop_footer_branch
      %13 = sbr.rel target = $region3
    $region8: #{tpu_custom_call.1} parent=1 // loop_exit
      _
    %431 = vsyncpa [#allocation4], 1
    %s432 = scalar_lea.sflag [#allocation4], 1
    %433 = vsyncpa %s432, 1
    %434 = vsyncpa [#allocation6], 1
    %s435 = scalar_lea.sflag [#allocation6], 1
    %436 = vsyncpa %s435, 1

</llo_original>
